<compile_context>
chip_gen: v7x
topology: tpu7x:2x2x1
jax: 0.10.0
libtpu: 0.0.40
codegen_flags: <defaults>
</compile_context>

<pallas_src>
import functools

import jax
import jax.numpy as jnp
from jax.experimental import pallas as pl
from jax.experimental.pallas import tpu as pltpu


def _bottleneck_kernel(x_ref, w_ref, b_ref, o_ref):
    """One (tm, N) output tile: full-K bf16 matmul, f32 accumulate, f32 bias."""
    acc = jnp.dot(x_ref[...], w_ref[...], preferred_element_type=jnp.float32)
    o_ref[...] = (acc + b_ref[...]).astype(o_ref.dtype)


def _round_up(x, m):
    return (x + m - 1) // m * m


@functools.partial(jax.jit, static_argnames=("tm",))
def _bottleneck_pallas(x, w_t, b2d, *, tm):
    M, K = x.shape
    _, N = w_t.shape

    cost = pl.CostEstimate(
        flops=2 * M * K * N,
        bytes_accessed=(M * K * x.dtype.itemsize          # x (bf16)
                        + K * N * w_t.dtype.itemsize       # weight (bf16)
                        + M * N * 4 + N * 4),              # out + bias (f32)
        transcendentals=0,
    )

    return pl.pallas_call(
        _bottleneck_kernel,
        out_shape=jax.ShapeDtypeStruct((M, N), jnp.float32),
        grid=(pl.cdiv(M, tm),),                            # ragged last block masked
        in_specs=[
            pl.BlockSpec((tm, K), lambda i: (i, 0)),       # x: streamed over batch
            pl.BlockSpec((K, N), lambda i: (0, 0)),        # weight: VMEM-resident
            pl.BlockSpec((1, N), lambda i: (0, 0)),        # bias:   VMEM-resident
        ],
        out_specs=pl.BlockSpec((tm, N), lambda i: (i, 0)),
        compiler_params=pltpu.CompilerParams(
            dimension_semantics=("parallel",),             # megacore sharding on v7x
        ),
        cost_estimate=cost,
    )(x, w_t, b2d)


def bottleneck_forward(x, w_t, b, *, max_tm=512):
    """y = x @ w_t + b   (x: [M, K], w_t: [K, N], b: [N]) -> [M, N] float32."""
    M, K = x.shape
    Kw, N = w_t.shape
    assert K == Kw and b.shape == (N,)

    if M == 0:                                             # empty-batch guard
        return jnp.zeros((0, N), dtype=jnp.float32)

    # bf16 inputs, f32 accumulation inside the kernel.
    x_bf = x.astype(jnp.bfloat16)
    w_bf = w_t.astype(jnp.bfloat16)
    b2d = b.astype(jnp.float32).reshape(1, N)

    # Batch tile: big enough to approach the HBM roofline, capped so the grid
    # keeps >= 2 steps when possible (v7x dual-TC), rounded to the 8-sublane tile.
    tm = min(_round_up(M, 8), max_tm, max(_round_up(pl.cdiv(M, 2), 8), 8))

    return _bottleneck_pallas(x_bf, w_bf, b2d, tm=tm)


def init_bottleneck_params(key, feature_dim, bottleneck_dim):
    """Matches PyTorch init: weight ~ N(0, 0.005), bias = 0.1.

    The weight is stored transposed ([feature_dim, bottleneck_dim]) and in
    bfloat16 (halves its HBM footprint / DMA); the bias stays float32.
    """
    w = 0.005 * jax.random.normal(
        key, (bottleneck_dim, feature_dim), dtype=jnp.float32)
    w_t = w.T.astype(jnp.bfloat16)                         # [feature_dim, bottleneck_dim]
    b = jnp.full((bottleneck_dim,), 0.1, dtype=jnp.float32)
    return w_t, b


if __name__ == "__main__":
    # Small shapes consistent with Linear(feature_dim, bottleneck_dim).
    batch = 8
    feature_dim = 512
    bottleneck_dim = 256

    key = jax.random.PRNGKey(0)
    k_x, k_w = jax.random.split(key)

    x = jax.random.normal(k_x, (batch, feature_dim), dtype=jnp.float32)
    w_t, b = init_bottleneck_params(k_w, feature_dim, bottleneck_dim)

    y = jax.block_until_ready(bottleneck_forward(x, w_t, b))

    # Reference with the same bf16-rounded inputs, exact f32 accumulation.
    x_r = x.astype(jnp.bfloat16).astype(jnp.float32)
    w_r = w_t.astype(jnp.float32)
    y_ref = jnp.dot(x_r, w_r, precision=jax.lax.Precision.HIGHEST) + b
    assert y.shape == (batch, bottleneck_dim)
    assert jnp.allclose(y, y_ref, atol=1e-3, rtol=1e-3)

    # Ragged / multi-tile path (batch not a multiple of the 8-row tile).
    x2 = jax.random.normal(jax.random.PRNGKey(1), (13, feature_dim),
                           dtype=jnp.float32)
    y2 = jax.block_until_ready(bottleneck_forward(x2, w_t, b))
    x2_r = x2.astype(jnp.bfloat16).astype(jnp.float32)
    y2_ref = jnp.dot(x2_r, w_r, precision=jax.lax.Precision.HIGHEST) + b
    assert y2.shape == (13, bottleneck_dim)
    assert jnp.allclose(y2, y2_ref, atol=1e-3, rtol=1e-3)

    print("KERNEL_OK")
</pallas_src>

<mosaic_0001>
module attributes {stable_mosaic.version = 11 : i64} {
  func.func @_bottleneck_kernel(%arg0: i32, %arg1: memref<8x512xbf16, #tpu.memory_space<vmem>>, %arg2: memref<512x256xbf16, #tpu.memory_space<vmem>>, %arg3: memref<1x256xf32, #tpu.memory_space<vmem>>, %arg4: memref<8x256xf32, #tpu.memory_space<vmem>>) attributes {dimension_semantics = [#tpu.dimension_semantics<parallel>], iteration_bounds = array<i64: 1>, scalar_prefetch = 0 : i64, scratch_operands = 0 : i64, tpu.core_type = #tpu.core_type<tc>, window_params = [{transform_indices = @transform_0, window_bounds = array<i64: 8, 512>}, {pipeline_mode = #tpu.pipeline_mode<synchronous>, transform_indices = @transform_1, window_bounds = array<i64: 512, 256>}, {pipeline_mode = #tpu.pipeline_mode<synchronous>, transform_indices = @transform_2, window_bounds = array<i64: 1, 256>}, {transform_indices = @transform_3, window_bounds = array<i64: 8, 256>}]} {
    %c0 = arith.constant 0 : index
    %c0_0 = arith.constant 0 : index
    %0 = vector.load %arg1[%c0, %c0_0] : memref<8x512xbf16, #tpu.memory_space<vmem>>, vector<8x512xbf16>
    %c0_1 = arith.constant 0 : index
    %c0_2 = arith.constant 0 : index
    %1 = vector.load %arg2[%c0_1, %c0_2] : memref<512x256xbf16, #tpu.memory_space<vmem>>, vector<512x256xbf16>
    %cst = arith.constant dense<0.000000e+00> : vector<8x256xf32>
    %2 = tpu.matmul %0, %1, %cst {dimension_numbers = #tpu.dot_dimension_numbers<[1], [0], [0], [1], [0, 0, 1, 1], [], []>} : vector<8x512xbf16>, vector<512x256xbf16>, vector<8x256xf32> -> vector<8x256xf32>
    %c0_3 = arith.constant 0 : index
    %c0_4 = arith.constant 0 : index
    %3 = vector.load %arg3[%c0_3, %c0_4] : memref<1x256xf32, #tpu.memory_space<vmem>>, vector<1x256xf32>
    %4 = vector.broadcast %3 : vector<1x256xf32> to vector<8x256xf32>
    %5 = arith.addf %2, %4 : vector<8x256xf32>
    %c0_5 = arith.constant 0 : index
    %c0_6 = arith.constant 0 : index
    %6 = vector.load %arg4[%c0_5, %c0_6] : memref<8x256xf32, #tpu.memory_space<vmem>>, vector<8x256xf32>
    tpu.vector_store %arg4[%c0_5, %c0_6], %5 {strides = array<i32>} : memref<8x256xf32, #tpu.memory_space<vmem>>, vector<8x256xf32>,
    return
  }
  func.func @transform_0(%arg0: i32) -> (i32, i32) {
    %c0_i32 = arith.constant 0 : i32
    %c0_i32_0 = arith.constant 0 : i32
    return %arg0, %c0_i32 : i32, i32
  }
  func.func @transform_1(%arg0: i32) -> (i32, i32) {
    %c0_i32 = arith.constant 0 : i32
    %c0_i32_0 = arith.constant 0 : i32
    %c0_i32_1 = arith.constant 0 : i32
    return %c0_i32, %c0_i32_0 : i32, i32
  }
  func.func @transform_2(%arg0: i32) -> (i32, i32) {
    %c0_i32 = arith.constant 0 : i32
    %c0_i32_0 = arith.constant 0 : i32
    %c0_i32_1 = arith.constant 0 : i32
    return %c0_i32, %c0_i32_0 : i32, i32
  }
  func.func @transform_3(%arg0: i32) -> (i32, i32) {
    %c0_i32 = arith.constant 0 : i32
    %c0_i32_0 = arith.constant 0 : i32
    return %arg0, %c0_i32 : i32, i32
  }
}

</mosaic_0001>

<llo_original>
// kernel: _bottleneck_pallas.1
$region0: #{_bottleneck_pallas.1}
  #allocation0 [shape = 'u32[]', space=smem, size = 0x4, offset = 0x4, fixed_abs, tag = 'smem constant byte address 0x4 - core index']
  #allocation1 [shape = 'u32[144,128]{1,0:T(1,128)}', space=vmem, size = 0x12000, scoped, tag = 'internal scratch']
  %s0 = inlined_call_operand.hbm [shape: bf16[8,512], index: 0, kind: input, shape index: {}]
  %s1 = inlined_call_operand.hbm [shape: bf16[512,256], index: 1, kind: input, shape index: {}]
  %s2 = inlined_call_operand.vmem [shape: f32[1,256], index: 2, kind: input, shape index: {}]
  %s3 = inlined_call_operand.hbm [shape: f32[8,256], index: 3, kind: output, shape index: {}]
  %s4 = sld [smem:[#allocation0]]
  $region30: #{_bottleneck_pallas.1} parent=0
    _
  %s6 = ssub.s32 1, %s4
  %s7 = scalar_select 0, %s6, %s4
  $region1: #{_bottleneck_pallas.1} parent=0
    #allocation2 [shape = 'u8[8192]{0}', space=vmem, size = 0x2000, scoped, tag = 'input window, operand 0, single buffered']
    #allocation3 [shape = 's32[1]{0}', space=sflag, size = 0x4, scoped, tag = 'scoped memory for _bottleneck_pallas.1']
    #allocation4 [shape = 's32[1]{0}', space=sflag, size = 0x4, scoped, tag = 'scoped memory for _bottleneck_pallas.1']
    #allocation5 [shape = 'u8[262144]{0}', space=vmem, size = 0x40000, scoped, tag = 'input window, operand 1, single buffered']
    #allocation6 [shape = 's32[1]{0}', space=sflag, size = 0x4, scoped, tag = 'scoped memory for _bottleneck_pallas.1']
    #allocation7 [shape = 'u8[8192]{0}', space=vmem, size = 0x2000, scoped, tag = 'output window, operand 0, single buffered']
    %8 = vsyncpa [#allocation3], 0
    %9 = vsyncpa [#allocation6], 0
    %10 = vsyncpa [#allocation4], 0
    // Predicated region
    $region2: #{_bottleneck_pallas.1} parent=1 // pred_check
      _
    $region3: #{_bottleneck_pallas.1} parent=1 // pred_check_branch
      %12 = sbr.rel (0) target = $region5
    $region4: #{_bottleneck_pallas.1} parent=1 // pred_region
      %s14 = ssub.s32 256, 256
      %15 = vsyncadd [#allocation3], %s14
      %s17 = sshll.u32 [#allocation2], 4
      %s18 = int_to_ptr.vmem [resolvable:$true] %s17
      %20 = dma.hbm_to_vmem [thread:$0]  %s0, 256, %s18, [#allocation3]
    $region5: #{_bottleneck_pallas.1} parent=1 // pred_fallthru
      _
    // Predicated region
    $region6: #{_bottleneck_pallas.1} parent=1 // pred_check
      _
    $region7: #{_bottleneck_pallas.1} parent=1 // pred_check_branch
      %22 = sbr.rel (0) target = $region9
    $region8: #{_bottleneck_pallas.1} parent=1 // pred_region
      %s24 = ssub.s32 8192, 8192
      %25 = vsyncadd [#allocation6], %s24
      %s26 = sshll.u32 [#allocation5], 4
      %s27 = int_to_ptr.vmem [resolvable:$true] %s26
      %32 = dma.hbm_to_vmem [thread:$0]  %s1, 8192, %s27, [#allocation6], 128, 128, 8
    $region9: #{_bottleneck_pallas.1} parent=1 // pred_fallthru
      _
    // Predicated region
    $region10: #{_bottleneck_pallas.1} parent=1 // pred_check
      _
    $region11: #{_bottleneck_pallas.1} parent=1 // pred_check_branch
      %34 = sbr.rel (0) target = $region13
    $region12: #{_bottleneck_pallas.1} parent=1 // pred_region
      _
    $region13: #{_bottleneck_pallas.1} parent=1 // pred_fallthru
      _
    // Predicated region
    $region14: #{_bottleneck_pallas.1} parent=1 // pred_check
      _
    $region15: #{_bottleneck_pallas.1} parent=1 // pred_check_branch
      %36 = sbr.rel (0) target = $region17
    $region16: #{_bottleneck_pallas.1} parent=1 // pred_region
      %37 = dma.done [#allocation3], 256
    $region17: #{_bottleneck_pallas.1} parent=1 // pred_fallthru
      _
    // Predicated region
    $region18: #{_bottleneck_pallas.1} parent=1 // pred_check
      _
    $region19: #{_bottleneck_pallas.1} parent=1 // pred_check_branch
      %39 = sbr.rel (0) target = $region21
    $region20: #{_bottleneck_pallas.1} parent=1 // pred_region
      %40 = dma.done [#allocation6], 8192
    $region21: #{_bottleneck_pallas.1} parent=1 // pred_fallthru
      _
    %v41 = vld [vmem:[#allocation2] sm:$0xff]
    %v42 = vld [vmem:[#allocation2 + $0x8] sm:$0xff]
    %v43 = vld [vmem:[#allocation5] sm:$0xff]
    %v44 = vld [vmem:[#allocation5 + $0x8] sm:$0xff]
    %v45 = vld [vmem:[#allocation5 + $0x10] sm:$0xff]
    %v46 = vld [vmem:[#allocation5 + $0x18] sm:$0xff]
    %v47 = vld [vmem:[#allocation5 + $0x20] sm:$0xff]
    %v48 = vld [vmem:[#allocation5 + $0x28] sm:$0xff]
    %v49 = vld [vmem:[#allocation5 + $0x30] sm:$0xff]
    %v50 = vld [vmem:[#allocation5 + $0x38] sm:$0xff]
    %v51 = vld [vmem:[#allocation5 + $0x40] sm:$0xff]
    %v52 = vld [vmem:[#allocation5 + $0x48] sm:$0xff]
    %v53 = vld [vmem:[#allocation5 + $0x50] sm:$0xff]
    %v54 = vld [vmem:[#allocation5 + $0x58] sm:$0xff]
    %v55 = vld [vmem:[#allocation5 + $0x60] sm:$0xff]
    %v56 = vld [vmem:[#allocation5 + $0x68] sm:$0xff]
    %v57 = vld [vmem:[#allocation5 + $0x70] sm:$0xff]
    %v58 = vld [vmem:[#allocation5 + $0x78] sm:$0xff]
    %v59 = vld [vmem:[#allocation5 + $0x80] sm:$0xff]
    %v60 = vld [vmem:[#allocation5 + $0x88] sm:$0xff]
    %v61 = vld [vmem:[#allocation5 + $0x90] sm:$0xff]
    %v62 = vld [vmem:[#allocation5 + $0x98] sm:$0xff]
    %v63 = vld [vmem:[#allocation5 + $0xa0] sm:$0xff]
    %v64 = vld [vmem:[#allocation5 + $0xa8] sm:$0xff]
    %v65 = vld [vmem:[#allocation5 + $0xb0] sm:$0xff]
    %v66 = vld [vmem:[#allocation5 + $0xb8] sm:$0xff]
    %v67 = vld [vmem:[#allocation5 + $0xc0] sm:$0xff]
    %v68 = vld [vmem:[#allocation5 + $0xc8] sm:$0xff]
    %v69 = vld [vmem:[#allocation5 + $0xd0] sm:$0xff]
    %v70 = vld [vmem:[#allocation5 + $0xd8] sm:$0xff]
    %v71 = vld [vmem:[#allocation5 + $0xe0] sm:$0xff]
    %v72 = vld [vmem:[#allocation5 + $0xe8] sm:$0xff]
    %v73 = vld [vmem:[#allocation5 + $0xf0] sm:$0xff]
    %v74 = vld [vmem:[#allocation5 + $0xf8] sm:$0xff]
    %v75 = vld [vmem:[#allocation5 + $0x100] sm:$0xff]
    %v76 = vld [vmem:[#allocation5 + $0x108] sm:$0xff]
    %v77 = vld [vmem:[#allocation5 + $0x110] sm:$0xff]
    %v78 = vld [vmem:[#allocation5 + $0x118] sm:$0xff]
    %v79 = vld [vmem:[#allocation5 + $0x120] sm:$0xff]
    %v80 = vld [vmem:[#allocation5 + $0x128] sm:$0xff]
    %v81 = vld [vmem:[#allocation5 + $0x130] sm:$0xff]
    %v82 = vld [vmem:[#allocation5 + $0x138] sm:$0xff]
    %v83 = vld [vmem:[#allocation5 + $0x140] sm:$0xff]
    %v84 = vld [vmem:[#allocation5 + $0x148] sm:$0xff]
    %v85 = vld [vmem:[#allocation5 + $0x150] sm:$0xff]
    %v86 = vld [vmem:[#allocation5 + $0x158] sm:$0xff]
    %v87 = vld [vmem:[#allocation5 + $0x160] sm:$0xff]
    %v88 = vld [vmem:[#allocation5 + $0x168] sm:$0xff]
    %v89 = vld [vmem:[#allocation5 + $0x170] sm:$0xff]
    %v90 = vld [vmem:[#allocation5 + $0x178] sm:$0xff]
    %v91 = vld [vmem:[#allocation5 + $0x180] sm:$0xff]
    %v92 = vld [vmem:[#allocation5 + $0x188] sm:$0xff]
    %v93 = vld [vmem:[#allocation5 + $0x190] sm:$0xff]
    %v94 = vld [vmem:[#allocation5 + $0x198] sm:$0xff]
    %v95 = vld [vmem:[#allocation5 + $0x1a0] sm:$0xff]
    %v96 = vld [vmem:[#allocation5 + $0x1a8] sm:$0xff]
    %v97 = vld [vmem:[#allocation5 + $0x1b0] sm:$0xff]
    %v98 = vld [vmem:[#allocation5 + $0x1b8] sm:$0xff]
    %v99 = vld [vmem:[#allocation5 + $0x1c0] sm:$0xff]
    %v100 = vld [vmem:[#allocation5 + $0x1c8] sm:$0xff]
    %v101 = vld [vmem:[#allocation5 + $0x1d0] sm:$0xff]
    %v102 = vld [vmem:[#allocation5 + $0x1d8] sm:$0xff]
    %v103 = vld [vmem:[#allocation5 + $0x1e0] sm:$0xff]
    %v104 = vld [vmem:[#allocation5 + $0x1e8] sm:$0xff]
    %v105 = vld [vmem:[#allocation5 + $0x1f0] sm:$0xff]
    %v106 = vld [vmem:[#allocation5 + $0x1f8] sm:$0xff]
    %v107 = vld [vmem:[%s2] sm:$0x3]
    %v109 = vlaneseq
    %v110 = vshrl.u32 %v109, 7
    %v111 = vsub.s32 0, %v110
    %v112 = vrot.slane %v107, %v111
    %v113 = vlaneseq
    %v114 = vshrl.u32 %v113, 7
    %v115 = vsub.s32 1, %v114
    %v116 = vrot.slane %v107, %v115
    %v121 = vunpack.c.l.b16 %v41
    %v122 = vunpack.c.h.b16 %v41
    %v123 = vunpack.c.l.b16 %v42
    %v124 = vunpack.c.h.b16 %v42
    %v125 = vpack.c.b16 %v121, %v121
    %v126 = vpack.c.b16 %v122, %v122
    %v127 = vpack.c.b16 %v123, %v123
    %v128 = vpack.c.b16 %v124, %v124
    %v197 = vunpack.c.l.b16 %v43
    %v198 = vunpack.c.h.b16 %v43
    %v199 = vunpack.c.l.b16 %v44
    %v200 = vunpack.c.h.b16 %v44
    %v201 = vunpack.c.l.b16 %v45
    %v202 = vunpack.c.h.b16 %v45
    %v203 = vunpack.c.l.b16 %v46
    %v204 = vunpack.c.h.b16 %v46
    %v205 = vunpack.c.l.b16 %v47
    %v206 = vunpack.c.h.b16 %v47
    %v207 = vunpack.c.l.b16 %v48
    %v208 = vunpack.c.h.b16 %v48
    %v209 = vunpack.c.l.b16 %v49
    %v210 = vunpack.c.h.b16 %v49
    %v211 = vunpack.c.l.b16 %v50
    %v212 = vunpack.c.h.b16 %v50
    %v213 = vunpack.c.l.b16 %v51
    %v214 = vunpack.c.h.b16 %v51
    %v215 = vunpack.c.l.b16 %v52
    %v216 = vunpack.c.h.b16 %v52
    %v217 = vunpack.c.l.b16 %v53
    %v218 = vunpack.c.h.b16 %v53
    %v219 = vunpack.c.l.b16 %v54
    %v220 = vunpack.c.h.b16 %v54
    %v221 = vunpack.c.l.b16 %v55
    %v222 = vunpack.c.h.b16 %v55
    %v223 = vunpack.c.l.b16 %v56
    %v224 = vunpack.c.h.b16 %v56
    %v225 = vunpack.c.l.b16 %v57
    %v226 = vunpack.c.h.b16 %v57
    %v227 = vunpack.c.l.b16 %v58
    %v228 = vunpack.c.h.b16 %v58
    %v229 = vunpack.c.l.b16 %v59
    %v230 = vunpack.c.h.b16 %v59
    %v231 = vunpack.c.l.b16 %v60
    %v232 = vunpack.c.h.b16 %v60
    %v233 = vunpack.c.l.b16 %v61
    %v234 = vunpack.c.h.b16 %v61
    %v235 = vunpack.c.l.b16 %v62
    %v236 = vunpack.c.h.b16 %v62
    %v237 = vunpack.c.l.b16 %v63
    %v238 = vunpack.c.h.b16 %v63
    %v239 = vunpack.c.l.b16 %v64
    %v240 = vunpack.c.h.b16 %v64
    %v241 = vunpack.c.l.b16 %v65
    %v242 = vunpack.c.h.b16 %v65
    %v243 = vunpack.c.l.b16 %v66
    %v244 = vunpack.c.h.b16 %v66
    %v245 = vunpack.c.l.b16 %v67
    %v246 = vunpack.c.h.b16 %v67
    %v247 = vunpack.c.l.b16 %v68
    %v248 = vunpack.c.h.b16 %v68
    %v249 = vunpack.c.l.b16 %v69
    %v250 = vunpack.c.h.b16 %v69
    %v251 = vunpack.c.l.b16 %v70
    %v252 = vunpack.c.h.b16 %v70
    %v253 = vunpack.c.l.b16 %v71
    %v254 = vunpack.c.h.b16 %v71
    %v255 = vunpack.c.l.b16 %v72
    %v256 = vunpack.c.h.b16 %v72
    %v257 = vunpack.c.l.b16 %v73
    %v258 = vunpack.c.h.b16 %v73
    %v259 = vunpack.c.l.b16 %v74
    %v260 = vunpack.c.h.b16 %v74
    %v261 = vunpack.c.l.b16 %v75
    %v262 = vunpack.c.h.b16 %v75
    %v263 = vunpack.c.l.b16 %v76
    %v264 = vunpack.c.h.b16 %v76
    %v265 = vunpack.c.l.b16 %v77
    %v266 = vunpack.c.h.b16 %v77
    %v267 = vunpack.c.l.b16 %v78
    %v268 = vunpack.c.h.b16 %v78
    %v269 = vunpack.c.l.b16 %v79
    %v270 = vunpack.c.h.b16 %v79
    %v271 = vunpack.c.l.b16 %v80
    %v272 = vunpack.c.h.b16 %v80
    %v273 = vunpack.c.l.b16 %v81
    %v274 = vunpack.c.h.b16 %v81
    %v275 = vunpack.c.l.b16 %v82
    %v276 = vunpack.c.h.b16 %v82
    %v277 = vunpack.c.l.b16 %v83
    %v278 = vunpack.c.h.b16 %v83
    %v279 = vunpack.c.l.b16 %v84
    %v280 = vunpack.c.h.b16 %v84
    %v281 = vunpack.c.l.b16 %v85
    %v282 = vunpack.c.h.b16 %v85
    %v283 = vunpack.c.l.b16 %v86
    %v284 = vunpack.c.h.b16 %v86
    %v285 = vunpack.c.l.b16 %v87
    %v286 = vunpack.c.h.b16 %v87
    %v287 = vunpack.c.l.b16 %v88
    %v288 = vunpack.c.h.b16 %v88
    %v289 = vunpack.c.l.b16 %v89
    %v290 = vunpack.c.h.b16 %v89
    %v291 = vunpack.c.l.b16 %v90
    %v292 = vunpack.c.h.b16 %v90
    %v293 = vunpack.c.l.b16 %v91
    %v294 = vunpack.c.h.b16 %v91
    %v295 = vunpack.c.l.b16 %v92
    %v296 = vunpack.c.h.b16 %v92
    %v297 = vunpack.c.l.b16 %v93
    %v298 = vunpack.c.h.b16 %v93
    %v299 = vunpack.c.l.b16 %v94
    %v300 = vunpack.c.h.b16 %v94
    %v301 = vunpack.c.l.b16 %v95
    %v302 = vunpack.c.h.b16 %v95
    %v303 = vunpack.c.l.b16 %v96
    %v304 = vunpack.c.h.b16 %v96
    %v305 = vunpack.c.l.b16 %v97
    %v306 = vunpack.c.h.b16 %v97
    %v307 = vunpack.c.l.b16 %v98
    %v308 = vunpack.c.h.b16 %v98
    %v309 = vunpack.c.l.b16 %v99
    %v310 = vunpack.c.h.b16 %v99
    %v311 = vunpack.c.l.b16 %v100
    %v312 = vunpack.c.h.b16 %v100
    %v313 = vunpack.c.l.b16 %v101
    %v314 = vunpack.c.h.b16 %v101
    %v315 = vunpack.c.l.b16 %v102
    %v316 = vunpack.c.h.b16 %v102
    %v317 = vunpack.c.l.b16 %v103
    %v318 = vunpack.c.h.b16 %v103
    %v319 = vunpack.c.l.b16 %v104
    %v320 = vunpack.c.h.b16 %v104
    %v321 = vunpack.c.l.b16 %v105
    %v322 = vunpack.c.h.b16 %v105
    %v323 = vunpack.c.l.b16 %v106
    %v324 = vunpack.c.h.b16 %v106
    %v325 = vpack.c.b16 %v199, %v197
    %v326 = vpack.c.b16 %v200, %v198
    %v327 = vpack.c.b16 %v203, %v201
    %v328 = vpack.c.b16 %v204, %v202
    %v329 = vpack.c.b16 %v207, %v205
    %v330 = vpack.c.b16 %v208, %v206
    %v331 = vpack.c.b16 %v211, %v209
    %v332 = vpack.c.b16 %v212, %v210
    %v333 = vpack.c.b16 %v215, %v213
    %v334 = vpack.c.b16 %v216, %v214
    %v335 = vpack.c.b16 %v219, %v217
    %v336 = vpack.c.b16 %v220, %v218
    %v337 = vpack.c.b16 %v223, %v221
    %v338 = vpack.c.b16 %v224, %v222
    %v339 = vpack.c.b16 %v227, %v225
    %v340 = vpack.c.b16 %v228, %v226
    %v341 = vpack.c.b16 %v231, %v229
    %v342 = vpack.c.b16 %v232, %v230
    %v343 = vpack.c.b16 %v235, %v233
    %v344 = vpack.c.b16 %v236, %v234
    %v345 = vpack.c.b16 %v239, %v237
    %v346 = vpack.c.b16 %v240, %v238
    %v347 = vpack.c.b16 %v243, %v241
    %v348 = vpack.c.b16 %v244, %v242
    %v349 = vpack.c.b16 %v247, %v245
    %v350 = vpack.c.b16 %v248, %v246
    %v351 = vpack.c.b16 %v251, %v249
    %v352 = vpack.c.b16 %v252, %v250
    %v353 = vpack.c.b16 %v255, %v253
    %v354 = vpack.c.b16 %v256, %v254
    %v355 = vpack.c.b16 %v259, %v257
    %v356 = vpack.c.b16 %v260, %v258
    %v357 = vpack.c.b16 %v263, %v261
    %v358 = vpack.c.b16 %v264, %v262
    %v359 = vpack.c.b16 %v267, %v265
    %v360 = vpack.c.b16 %v268, %v266
    %v361 = vpack.c.b16 %v271, %v269
    %v362 = vpack.c.b16 %v272, %v270
    %v363 = vpack.c.b16 %v275, %v273
    %v364 = vpack.c.b16 %v276, %v274
    %v365 = vpack.c.b16 %v279, %v277
    %v366 = vpack.c.b16 %v280, %v278
    %v367 = vpack.c.b16 %v283, %v281
    %v368 = vpack.c.b16 %v284, %v282
    %v369 = vpack.c.b16 %v287, %v285
    %v370 = vpack.c.b16 %v288, %v286
    %v371 = vpack.c.b16 %v291, %v289
    %v372 = vpack.c.b16 %v292, %v290
    %v373 = vpack.c.b16 %v295, %v293
    %v374 = vpack.c.b16 %v296, %v294
    %v375 = vpack.c.b16 %v299, %v297
    %v376 = vpack.c.b16 %v300, %v298
    %v377 = vpack.c.b16 %v303, %v301
    %v378 = vpack.c.b16 %v304, %v302
    %v379 = vpack.c.b16 %v307, %v305
    %v380 = vpack.c.b16 %v308, %v306
    %v381 = vpack.c.b16 %v311, %v309
    %v382 = vpack.c.b16 %v312, %v310
    %v383 = vpack.c.b16 %v315, %v313
    %v384 = vpack.c.b16 %v316, %v314
    %v385 = vpack.c.b16 %v319, %v317
    %v386 = vpack.c.b16 %v320, %v318
    %v387 = vpack.c.b16 %v323, %v321
    %v388 = vpack.c.b16 %v324, %v322
    %453 = vmatprep.subr.bf16.mxu0 %v326
    %454 = vmatpush1.bf16.msra.mxu0 %v325
    %455 = vmatprep.subr.bf16.mxu0 %v328
    %456 = vmatpush1.bf16.msra.mxu0 %v327
    %457 = vmatprep.subr.bf16.mxu0 %v330
    %458 = vmatpush1.bf16.msra.mxu0 %v329
    %459 = vmatprep.subr.bf16.mxu0 %v332
    %460 = vmatpush1.bf16.msra.mxu0 %v331
    %461 = vmatprep.subr.bf16.mxu0 %v334
    %462 = vmatpush1.bf16.msra.mxu0 %v333
    %463 = vmatprep.subr.bf16.mxu0 %v336
    %464 = vmatpush1.bf16.msra.mxu0 %v335
    %465 = vmatprep.subr.bf16.mxu0 %v338
    %466 = vmatpush1.bf16.msra.mxu0 %v337
    %467 = vmatprep.subr.bf16.mxu0 %v340
    %468 = vmatpush1.bf16.msra.mxu0 %v339
    %469 = vmatprep.subr.bf16.mxu0 %v342
    %470 = vmatpush1.bf16.msra.mxu0 %v341
    %471 = vmatprep.subr.bf16.mxu0 %v344
    %472 = vmatpush1.bf16.msra.mxu0 %v343
    %473 = vmatprep.subr.bf16.mxu0 %v346
    %474 = vmatpush1.bf16.msra.mxu0 %v345
    %475 = vmatprep.subr.bf16.mxu0 %v348
    %476 = vmatpush1.bf16.msra.mxu0 %v347
    %477 = vmatprep.subr.bf16.mxu0 %v350
    %478 = vmatpush1.bf16.msra.mxu0 %v349
    %479 = vmatprep.subr.bf16.mxu0 %v352
    %480 = vmatpush1.bf16.msra.mxu0 %v351
    %481 = vmatprep.subr.bf16.mxu0 %v354
    %482 = vmatpush1.bf16.msra.mxu0 %v353
    %483 = vmatprep.subr.bf16.mxu0 %v356
    %484 = vmatpush1.bf16.msra.mxu0 %v355
    %485 = vmatprep.mubr.bf16.mxu0 %v126
    %486 = vmatmul.mubr.bf16.gmra.mrb[0].mxu0 %v125
    %v487 = vpop.f32.mrb[0].mxu0
    %v488 = vadd.f32 %v112, %v487
    %v489 = vpop.f32.mrb[0].mxu0
    %v490 = vadd.f32 %v116, %v489
    %v491 = vpop.f32.mrb[0].mxu0
    %v492 = vpop.f32.mrb[0].mxu0
    %493 = vdwg.mxu0
    %494 = vmatprep.subr.bf16.mxu0 %v358
    %495 = vmatpush1.bf16.msra.mxu0 %v357
    %496 = vmatprep.subr.bf16.mxu0 %v360
    %497 = vmatpush1.bf16.msra.mxu0 %v359
    %498 = vmatprep.subr.bf16.mxu0 %v362
    %499 = vmatpush1.bf16.msra.mxu0 %v361
    %500 = vmatprep.subr.bf16.mxu0 %v364
    %501 = vmatpush1.bf16.msra.mxu0 %v363
    %502 = vmatprep.subr.bf16.mxu0 %v366
    %503 = vmatpush1.bf16.msra.mxu0 %v365
    %504 = vmatprep.subr.bf16.mxu0 %v368
    %505 = vmatpush1.bf16.msra.mxu0 %v367
    %506 = vmatprep.subr.bf16.mxu0 %v370
    %507 = vmatpush1.bf16.msra.mxu0 %v369
    %508 = vmatprep.subr.bf16.mxu0 %v372
    %509 = vmatpush1.bf16.msra.mxu0 %v371
    %510 = vmatprep.subr.bf16.mxu0 %v374
    %511 = vmatpush1.bf16.msra.mxu0 %v373
    %512 = vmatprep.subr.bf16.mxu0 %v376
    %513 = vmatpush1.bf16.msra.mxu0 %v375
    %514 = vmatprep.subr.bf16.mxu0 %v378
    %515 = vmatpush1.bf16.msra.mxu0 %v377
    %516 = vmatprep.subr.bf16.mxu0 %v380
    %517 = vmatpush1.bf16.msra.mxu0 %v379
    %518 = vmatprep.subr.bf16.mxu0 %v382
    %519 = vmatpush1.bf16.msra.mxu0 %v381
    %520 = vmatprep.subr.bf16.mxu0 %v384
    %521 = vmatpush1.bf16.msra.mxu0 %v383
    %522 = vmatprep.subr.bf16.mxu0 %v386
    %523 = vmatpush1.bf16.msra.mxu0 %v385
    %524 = vmatprep.subr.bf16.mxu0 %v388
    %525 = vmatpush1.bf16.msra.mxu0 %v387
    %526 = vmatprep.mubr.bf16.mxu0 %v128
    %527 = vmatmul.mubr.bf16.gmra.mrb[0].mxu0 %v127
    %v528 = vpop.f32.mrb[0].mxu0
    %v529 = vadd.f32 %v488, %v528
    %v530 = vpop.f32.mrb[0].mxu0
    %v531 = vadd.f32 %v490, %v530
    %v532 = vpop.f32.mrb[0].mxu0
    %v533 = vpop.f32.mrb[0].mxu0
    %534 = vdwg.mxu0
    %535 = vst [vmem:[#allocation7] sm:$0xff] %v529
    %536 = vst [vmem:[#allocation7 + $0x8] sm:$0xff] %v531
    // Predicated region
    $region22: #{_bottleneck_pallas.1} parent=1 // pred_check
      _
    $region23: #{_bottleneck_pallas.1} parent=1 // pred_check_branch
      %538 = sbr.rel (0) target = $region25
    $region24: #{_bottleneck_pallas.1} parent=1 // pred_region
      %s540 = ssub.s32 256, 256
      %541 = vsyncadd [#allocation4], %s540
      %s543 = sshll.u32 [#allocation7], 4
      %s544 = int_to_ptr.vmem [resolvable:$true] %s543
      %546 = dma.vmem_to_hbm [thread:$0]  %s544, 256, %s3, [#allocation4]
    $region25: #{_bottleneck_pallas.1} parent=1 // pred_fallthru
      _
    // Predicated region
    $region26: #{_bottleneck_pallas.1} parent=1 // pred_check
      _
    $region27: #{_bottleneck_pallas.1} parent=1 // pred_check_branch
      %548 = sbr.rel (0) target = $region29
    $region28: #{_bottleneck_pallas.1} parent=1 // pred_region
      %549 = dma.done [#allocation4], 256
    $region29: #{_bottleneck_pallas.1} parent=1 // pred_fallthru
      _
    %550 = vsyncpa [#allocation3], 1
    %551 = vsyncpa [#allocation6], 1
    %552 = vsyncpa [#allocation4], 1

</llo_original>
